<compile_context>
chip_gen: v7x
topology: tpu7x:2x2x1
jax: 0.10.0
libtpu: 0.0.40
codegen_flags: <defaults>
</compile_context>

<pallas_src>
import jax
import jax.numpy as jnp
from jax.experimental import pallas as pl
from jax.experimental.pallas import tpu as pltpu

_LANES = 128
_TARGET_TILE_ROWS = 4096              # (4096, 128) f32 = 2 MiB per input per buffer
_VMEM_LIMIT_BYTES = 32 * 1024 * 1024  # safe headroom on v5e/v6e (128 MiB) and v7x (64 MiB)


def _num_tensorcores() -> int:
    """TensorCores a single Pallas kernel can shard over: 2 on v7x, else 1."""
    try:
        kind = jax.devices()[0].device_kind.lower()
    except Exception:
        return 1
    return 2 if "v7" in kind else 1


def _make_mse_kernel(tile_rows, rows_total, total_tiles, tiles_per_core,
                     need_row_mask, has_overhang):
    """Accumulate per-lane partial sums of (p - t)^2 into a resident (1,128) block.

    Grid = (cores, tiles_per_core).  The inner axis is 'arbitrary', so the
    (1, 128) output block for the current core stays resident in VMEM and is
    used as a vector accumulator; only a sublane reduction happens per step.
    """

    def kernel(p_ref, t_ref, o_ref):
        c = pl.program_id(0)   # core-split axis
        i = pl.program_id(1)   # streaming (reduction) axis

        @pl.when(i == 0)
        def _init():
            o_ref[...] = jnp.zeros_like(o_ref)

        def _accumulate():
            d = p_ref[...].astype(jnp.float32) - t_ref[...].astype(jnp.float32)
            sq = d * d
            if need_row_mask:
                # Ragged last tile: rows >= rows_total were never part of the
                # input (DMA contents beyond the array are unspecified), so
                # zero their contribution.  For non-final tiles `valid` exceeds
                # tile_rows and the mask is all-true.
                g = c * tiles_per_core + i
                valid = rows_total - g * tile_rows
                row_id = jax.lax.broadcasted_iota(
                    jnp.int32, (tile_rows, _LANES), 0)
                sq = jnp.where(row_id < valid, sq, 0.0)
            o_ref[...] += jnp.sum(sq, axis=0, keepdims=True)

        if has_overhang:
            # Odd tile count split across 2 cores: the final (c, i) slot maps
            # (via the clamped index_map) to a duplicate tile; skip it.
            g = c * tiles_per_core + i

            @pl.when(g < total_tiles)
            def _():
                _accumulate()
        else:
            _accumulate()

    return kernel


def _bulk_sq_sum(p2d, t2d):
    """sum((p - t)^2) over the lane-dense (rows_total, 128) view, fully in Pallas."""
    rows_total = p2d.shape[0]
    dtype_bytes = jnp.dtype(p2d.dtype).itemsize

    if rows_total >= _TARGET_TILE_ROWS:
        tile_rows = _TARGET_TILE_ROWS        # multiple of 8 -> legal block dim
    else:
        tile_rows = rows_total               # full-array block: always legal
    total_tiles = (rows_total + tile_rows - 1) // tile_rows
    need_row_mask = (rows_total % tile_rows) != 0

    cores = _num_tensorcores()
    if total_tiles < 2:
        cores = 1
    tiles_per_core = (total_tiles + cores - 1) // cores
    has_overhang = cores * tiles_per_core > total_tiles

    def in_index_map(c, i):
        g = c * tiles_per_core + i
        if has_overhang:
            # Never point a DMA at a fully out-of-range tile; the kernel skips
            # the duplicate's contribution.
            g = jnp.minimum(g, total_tiles - 1)
        return (g, 0)

    kernel = _make_mse_kernel(tile_rows, rows_total, total_tiles,
                              tiles_per_core, need_row_mask, has_overhang)

    if cores > 1:
        # Only CORE_PARALLEL actually shards a grid axis across TensorCores.
        dim_sem = (pltpu.CORE_PARALLEL, pltpu.ARBITRARY)
    else:
        dim_sem = ("arbitrary", "arbitrary")

    n_bulk = rows_total * _LANES
    partial = pl.pallas_call(
        kernel,
        out_shape=jax.ShapeDtypeStruct((1, cores * _LANES), jnp.float32),
        grid_spec=pltpu.PrefetchScalarGridSpec(
            num_scalar_prefetch=0,
            grid=(cores, tiles_per_core),
            in_specs=[
                pl.BlockSpec((tile_rows, _LANES), in_index_map),
                pl.BlockSpec((tile_rows, _LANES), in_index_map),
            ],
            # One disjoint lane-block of the (1, cores*128) output per core;
            # constant across the inner axis -> resident accumulator.
            out_specs=pl.BlockSpec((1, _LANES), lambda c, i: (0, c)),
        ),
        compiler_params=pltpu.CompilerParams(
            dimension_semantics=dim_sem,
            vmem_limit_bytes=_VMEM_LIMIT_BYTES,
        ),
        cost_estimate=pl.CostEstimate(
            flops=3 * n_bulk,
            transcendentals=0,
            bytes_accessed=2 * n_bulk * dtype_bytes,
        ),
    )(p2d, t2d)
    return jnp.sum(partial)


def edm_loss(pred_state, target_state, t=None, sigma_data=0.5):
    """JAX/Pallas equivalent of EDM_loss.forward: mean((pred - target)^2).

    `t` and `sigma_data` are accepted for signature parity but unused, exactly
    as in the reference forward pass.
    """
    assert pred_state.shape == target_state.shape
    n_elems = pred_state.size

    p_flat = pred_state.reshape(-1)
    t_flat = target_state.reshape(-1)

    rows_total = n_elems // _LANES
    lane_rem = n_elems - rows_total * _LANES

    if rows_total == 0:
        # Tiny input (< 128 elements): nothing to tile, pure-JAX fallback.
        d = p_flat.astype(jnp.float32) - t_flat.astype(jnp.float32)
        return jnp.sum(d * d) / jnp.float32(n_elems)

    if lane_rem == 0:
        # Common case: pure bitcast reshape, no HBM copy.
        p2d = p_flat.reshape(rows_total, _LANES)
        t2d = t_flat.reshape(rows_total, _LANES)
    else:
        # Ragged element count: the prefix slice materializes a copy of both
        # inputs because pallas_call is opaque to XLA fusion.
        # TODO(synk): avoid this copy by passing the flat inputs with
        # memory_space=pl.ANY and manually DMA-ing (tile_rows, 128) windows.
        p2d = p_flat[: rows_total * _LANES].reshape(rows_total, _LANES)
        t2d = t_flat[: rows_total * _LANES].reshape(rows_total, _LANES)

    # All full lane-rows are reduced inside the Pallas kernel (ragged last
    # tile masked in-kernel); only a < 128-element lane tail remains here.
    sq_sum = _bulk_sq_sum(p2d, t2d)

    if lane_rem:
        pt = p_flat[rows_total * _LANES:].astype(jnp.float32)
        tt = t_flat[rows_total * _LANES:].astype(jnp.float32)
        d = pt - tt
        sq_sum = sq_sum + jnp.sum(d * d)

    return sq_sum / jnp.float32(n_elems)


if __name__ == "__main__":
    key = jax.random.PRNGKey(0)
    k1, k2, k3, k4, k5, k6, k7 = jax.random.split(key, 7)

    loss_fn = jax.jit(edm_loss)

    # Case 1: docstring shape B x W x H, small (single-block path).
    B, W, H = 2, 16, 16
    pred_state = jax.random.normal(k1, (B, W, H), dtype=jnp.float32)
    target_state = jax.random.normal(k2, (B, W, H), dtype=jnp.float32)
    t = jax.random.uniform(k3, (B,), dtype=jnp.float32)  # unused by forward
    loss = jax.block_until_ready(loss_fn(pred_state, target_state, t))
    ref = jnp.mean((pred_state - target_state) ** 2)
    assert jnp.allclose(loss, ref, rtol=1e-4, atol=1e-6), (loss, ref)

    # Case 2: multi-tile path with a ragged, in-kernel-masked last tile
    # (526336 elems -> 4112 rows -> 2 tiles of 4096 rows, second has 16 valid).
    B2, W2, H2 = 8, 256, 257
    p2 = jax.random.normal(k4, (B2, W2, H2), dtype=jnp.float32)
    t2 = jax.random.normal(k5, (B2, W2, H2), dtype=jnp.float32)
    loss2 = jax.block_until_ready(loss_fn(p2, t2, None))
    ref2 = jnp.mean((p2 - t2) ** 2)
    assert jnp.allclose(loss2, ref2, rtol=1e-4, atol=1e-6), (loss2, ref2)

    # Case 3: element count not divisible by 128 (lane-tail path).
    B3, W3, H3 = 2, 16, 17
    p3 = jax.random.normal(k6, (B3, W3, H3), dtype=jnp.float32)
    t3 = jax.random.normal(k7, (B3, W3, H3), dtype=jnp.float32)
    loss3 = jax.block_until_ready(loss_fn(p3, t3, None))
    ref3 = jnp.mean((p3 - t3) ** 2)
    assert jnp.allclose(loss3, ref3, rtol=1e-4, atol=1e-6), (loss3, ref3)

    print("KERNEL_OK")
</pallas_src>

<mosaic_0001>
module attributes {stable_mosaic.version = 11 : i64} {
  func.func @kernel(%arg0: i32, %arg1: i32, %arg2: memref<4x128xf32, #tpu.memory_space<vmem>>, %arg3: memref<4x128xf32, #tpu.memory_space<vmem>>, %arg4: memref<1x128xf32, #tpu.memory_space<vmem>>) attributes {dimension_semantics = [#tpu.dimension_semantics<arbitrary>, #tpu.dimension_semantics<arbitrary>], iteration_bounds = array<i64: 1, 1>, scalar_prefetch = 0 : i64, scratch_operands = 0 : i64, tpu.core_type = #tpu.core_type<tc>, window_params = [{transform_indices = @transform_0, window_bounds = array<i64: 4, 128>}, {transform_indices = @transform_1, window_bounds = array<i64: 4, 128>}, {transform_indices = @transform_2, window_bounds = array<i64: 1, 128>}]} {
    %c0_i32 = arith.constant 0 : i32
    %0 = arith.cmpi eq, %arg1, %c0_i32 : i32
    %1 = arith.extui %0 : i1 to i32
    %c0_i32_0 = arith.constant 0 : i32
    %2 = arith.cmpi ne, %1, %c0_i32_0 : i32
    scf.if %2 {
      %cst_8 = arith.constant 0.000000e+00 : f32
      %12 = vector.broadcast %cst_8 : f32 to vector<1x128xf32>
      %c0_9 = arith.constant 0 : index
      %c0_10 = arith.constant 0 : index
      %13 = vector.load %arg4[%c0_9, %c0_10] : memref<1x128xf32, #tpu.memory_space<vmem>>, vector<1x128xf32>
      tpu.vector_store %arg4[%c0_9, %c0_10], %12 {strides = array<i32>} : memref<1x128xf32, #tpu.memory_space<vmem>>, vector<1x128xf32>,
    } else {
    }
    %c0 = arith.constant 0 : index
    %c0_1 = arith.constant 0 : index
    %3 = vector.load %arg2[%c0, %c0_1] : memref<4x128xf32, #tpu.memory_space<vmem>>, vector<4x128xf32>
    %c0_2 = arith.constant 0 : index
    %c0_3 = arith.constant 0 : index
    %4 = vector.load %arg3[%c0_2, %c0_3] : memref<4x128xf32, #tpu.memory_space<vmem>>, vector<4x128xf32>
    %5 = arith.subf %3, %4 : vector<4x128xf32>
    %6 = arith.mulf %5, %5 : vector<4x128xf32>
    %c0_4 = arith.constant 0 : index
    %c0_5 = arith.constant 0 : index
    %7 = vector.load %arg4[%c0_4, %c0_5] : memref<1x128xf32, #tpu.memory_space<vmem>>, vector<1x128xf32>
    %cst = arith.constant dense<0.000000e+00> : vector<128xf32>
    %8 = vector.multi_reduction <add>, %6, %cst [0] : vector<4x128xf32> to vector<128xf32>
    %9 = vector.shape_cast %8 : vector<128xf32> to vector<1x128xf32>
    %10 = arith.addf %7, %9 : vector<1x128xf32>
    %c0_6 = arith.constant 0 : index
    %c0_7 = arith.constant 0 : index
    %11 = vector.load %arg4[%c0_6, %c0_7] : memref<1x128xf32, #tpu.memory_space<vmem>>, vector<1x128xf32>
    tpu.vector_store %arg4[%c0_6, %c0_7], %10 {strides = array<i32>} : memref<1x128xf32, #tpu.memory_space<vmem>>, vector<1x128xf32>,
    return
  }
  func.func @transform_0(%arg0: i32, %arg1: i32) -> (i32, i32) {
    %c1_i32 = arith.constant 1 : i32
    %0 = arith.muli %arg0, %c1_i32 : i32
    %1 = arith.addi %0, %arg1 : i32
    %c0_i32 = arith.constant 0 : i32
    %c0_i32_0 = arith.constant 0 : i32
    return %1, %c0_i32 : i32, i32
  }
  func.func @transform_1(%arg0: i32, %arg1: i32) -> (i32, i32) {
    %c1_i32 = arith.constant 1 : i32
    %0 = arith.muli %arg0, %c1_i32 : i32
    %1 = arith.addi %0, %arg1 : i32
    %c0_i32 = arith.constant 0 : i32
    %c0_i32_0 = arith.constant 0 : i32
    return %1, %c0_i32 : i32, i32
  }
  func.func @transform_2(%arg0: i32, %arg1: i32) -> (i32, i32) {
    %c0_i32 = arith.constant 0 : i32
    %c0_i32_0 = arith.constant 0 : i32
    return %c0_i32, %arg0 : i32, i32
  }
}

</mosaic_0001>

<llo_original>
// kernel: edm_loss.1
$region0: #{edm_loss.1}
  #allocation0 [shape = 'u32[]', space=smem, size = 0x4, offset = 0x4, fixed_abs, tag = 'smem constant byte address 0x4 - core index']
  #allocation1 [shape = 'u32[144,128]{1,0:T(1,128)}', space=vmem, size = 0x12000, scoped, tag = 'internal scratch']
  %s0 = inlined_call_operand.vmem [shape: f32[4,128], index: 0, kind: input, shape index: {}]
  %s1 = inlined_call_operand.vmem [shape: f32[4,128], index: 1, kind: input, shape index: {}]
  %s2 = inlined_call_operand.vmem [shape: f32[1,128], index: 2, kind: output, shape index: {}]
  %s3 = sld [smem:[#allocation0]]
  $region22: #{edm_loss.1} parent=0
    _
  %s5 = ssub.s32 1, %s3
  %s6 = scalar_select 0, %s5, %s3
  // Predicated region
  $region2: #{edm_loss.1} parent=0 // pred_check
    _
  $region3: #{edm_loss.1} parent=0 // pred_check_branch
    %8 = sbr.rel (0) target = $region5
  $region4: #{edm_loss.1} parent=0 // pred_region
    %s9 = sadd.s32 0, 0
    %p10 = scmp.lt.s32.totalorder %s9, 0
    %s11 = scalar_select %p10, %s9, 0
    %s12 = smul.addr %s11, 4
    %s13 = scalar_lea.vmem %s0, %s12
    %s14 = sadd.s32 0, 0
  $region5: #{edm_loss.1} parent=0 // pred_fallthru
    _
  // Predicated region
  $region6: #{edm_loss.1} parent=0 // pred_check
    _
  $region7: #{edm_loss.1} parent=0 // pred_check_branch
    %16 = sbr.rel (0) target = $region9
  $region8: #{edm_loss.1} parent=0 // pred_region
    %s17 = sadd.s32 0, 0
    %p18 = scmp.lt.s32.totalorder %s17, 0
    %s19 = scalar_select %p18, %s17, 0
    %s20 = smul.addr %s19, 4
    %s21 = scalar_lea.vmem %s1, %s20
    %s22 = sadd.s32 0, 0
  $region9: #{edm_loss.1} parent=0 // pred_fallthru
    _
  %s23 = sadd.s32 0, 0
  %p24 = scmp.lt.s32.totalorder %s23, 0
  %s25 = scalar_select %p24, %s23, 0
  %s26 = smul.addr %s25, 4
  %s27 = scalar_lea.vmem %s0, %s26
  %s28 = sadd.s32 0, 0
  %p29 = scmp.lt.s32.totalorder %s28, 0
  %s30 = scalar_select %p29, %s28, 0
  %s31 = smul.addr %s30, 4
  %s32 = scalar_lea.vmem %s1, %s31
  %s33 = sadd.s32 0, 0
  %p34 = scmp.lt.s32.totalorder %s33, 0
  %s35 = scalar_select %p34, %s33, 0
  %s36 = smul.addr %s35, 4
  %s37 = scalar_lea.vmem %s0, %s36
  %s38 = sadd.s32 0, 0
  %s39 = sadd.s32 0, 0
  %p40 = scmp.lt.s32.totalorder %s39, 0
  %s41 = scalar_select %p40, %s39, 0
  %s42 = smul.addr %s41, 4
  %s43 = scalar_lea.vmem %s1, %s42
  %s44 = sadd.s32 0, 0
  %p45 = scmp.eq.s32.totalorder 0, 0
  // Predicated region
  $region10: #{edm_loss.1} parent=0 // pred_check
    %p46 = pneg %p45
  $region11: #{edm_loss.1} parent=0 // pred_check_branch
    %48 = sbr.rel (%p46) target = $region13
  $region12: #{edm_loss.1} parent=0 // pred_region
    %49 = vst [vmem:[%s2] sm:$0x1] 0.0
  $region13: #{edm_loss.1} parent=0 // pred_fallthru
    _
  %v50 = vld [vmem:[%s37] sm:$0xf]
  %v51 = vld [vmem:[%s43] sm:$0xf]
  %v52 = vsub.f32 %v50, %v51
  %v53 = vmul.f32 %v52, %v52
  %v54 = vld [vmem:[%s2] sm:$0x1]
  %vm55 = vcmask 1043456
  %v56 = vsel %vm55, %v53, 0.0
  %v57 = vrot.slane %v56, 4
  %v58 = vadd.f32 %v56, %v57
  %v59 = vrot.slane %v58, 2
  %v60 = vadd.f32 %v58, %v59
  %v61 = vrot.slane %v60, 1
  %v62 = vadd.f32 %v60, %v61
  %v63 = vadd.f32 %v54, %v62
  %64 = vst [vmem:[%s2] sm:$0x1] %v63
  // Predicated region
  $region14: #{edm_loss.1} parent=0 // pred_check
    _
  $region15: #{edm_loss.1} parent=0 // pred_check_branch
    %66 = sbr.rel (0) target = $region17
  $region16: #{edm_loss.1} parent=0 // pred_region
    _
  $region17: #{edm_loss.1} parent=0 // pred_fallthru
    _
  // Predicated region
  $region18: #{edm_loss.1} parent=0 // pred_check
    _
  $region19: #{edm_loss.1} parent=0 // pred_check_branch
    %68 = sbr.rel (0) target = $region21
  $region20: #{edm_loss.1} parent=0 // pred_region
    _
  $region21: #{edm_loss.1} parent=0 // pred_fallthru
    _

</llo_original>
